<compile_context>
chip_gen: v5e
topology: v5e:2x2
jax: 0.10.0
libtpu: 0.0.40
codegen_flags: <defaults>
</compile_context>

<pallas_src>
import functools

import jax
import jax.numpy as jnp
from jax.experimental import pallas as pl
from jax.experimental.pallas import tpu as pltpu


def _layernorm_kernel(x_ref, gamma_ref, beta_ref, o_ref, *, eps):
    # x_ref: (tile_rows, F) VMEM tile; gamma/beta: (1, F) broadcast rows.
    x = x_ref[...].astype(jnp.float32)
    feat = x.shape[-1]

    # One-pass statistics: sum and sum-of-squares over the lane axis; no
    # materialized (tile_rows, F) diff slab, single reduction pass.
    s = jnp.sum(x, axis=-1, keepdims=True)
    sq = jnp.sum(x * x, axis=-1, keepdims=True)
    mean = s * jnp.float32(1.0 / feat)
    # torch.std defaults to unbiased (ddof=1) -> divide by (F - 1).
    var = (sq - jnp.float32(feat) * mean * mean) * jnp.float32(1.0 / (feat - 1))
    var = jnp.maximum(var, jnp.float32(0.0))  # guard fp32 cancellation
    std = jnp.sqrt(var)

    # Exact per-row reciprocal: operand is only (tile_rows, 1) and the kernel
    # is HBM-bound, so this costs nothing and keeps parity with the reference.
    inv = jnp.float32(1.0) / (std + jnp.float32(eps))

    gamma = gamma_ref[...].astype(jnp.float32)
    beta = beta_ref[...].astype(jnp.float32)

    o_ref[...] = ((x - mean) * inv * gamma + beta).astype(o_ref.dtype)


def _vmem_budgets():
    """(vmem_limit_bytes, tile_bytes_budget) derived from the chip's VMEM size."""
    try:
        vmem_cap = pltpu.get_tpu_info().vmem_capacity_bytes
    except Exception:
        vmem_cap = 64 * 1024 * 1024  # conservative default (v7x per-TC VMEM)
    # Scoped limit: <= half of physical VMEM, never above 40 MiB.
    vmem_limit = min(vmem_cap // 2, 40 * 1024 * 1024)
    # Pipeline-buffer budget: leaves headroom for fp32 temporaries and
    # compiler-internal scratch under the scoped limit.
    tile_budget = min(vmem_limit // 3, 14 * 1024 * 1024)
    return int(vmem_limit), int(tile_budget)


def _pick_tile_rows(rows, feat, dtype, tile_bytes_budget,
                    per_buffer_cap_bytes=6 * 1024 * 1024):
    """Row-tile such that pipeline buffers + fp32 temporaries fit the budget."""
    itemsize = jnp.dtype(dtype).itemsize
    # Sublane multiple: 8 for 32-bit, 16 for bf16, 32 for int8/fp8.
    sub = max(8, 32 // itemsize)

    # Resident bytes per row: (input + output) tiles x 2 buffers each, plus
    # ~2 fp32-width temporaries (upcast slab / fused intermediates).
    per_row = 4 * feat * itemsize + 2 * feat * 4
    tile = tile_bytes_budget // max(per_row, 1)

    # Cap by bytes-per-buffer (not a fixed row count) so small-F inputs still
    # get large tiles while any single buffer stays modest.
    tile = min(tile, per_buffer_cap_bytes // max(feat * itemsize, 1))

    # Keep >= ~8 grid blocks for large inputs: pipeline depth to hide DMA and
    # both TensorCores busy on v7x megacore.
    if rows > 8 * sub:
        tile = min(tile, pl.cdiv(rows, 8))

    tile = max(sub, (int(tile) // sub) * sub)          # sublane multiple
    tile = min(tile, max(sub, ((rows + sub - 1) // sub) * sub))  # <= rounded rows
    return int(tile)


def layer_norm(x, gamma, beta, *, eps=1e-6, tile_rows=None):
    """LayerNorm over the last axis of x. gamma/beta have shape (features,)."""
    orig_shape = x.shape
    feat = orig_shape[-1]
    rows = 1
    for d in orig_shape[:-1]:
        rows *= d

    x2d = x.reshape(rows, feat)          # free, row-major contiguous
    gamma2d = gamma.reshape(1, feat)
    beta2d = beta.reshape(1, feat)

    vmem_limit_bytes, tile_bytes_budget = _vmem_budgets()
    if tile_rows is None:
        tile_rows = _pick_tile_rows(rows, feat, x.dtype, tile_bytes_budget)

    # Ragged last block handled by Pallas (reads padded, writes masked); per-row
    # normalization means padded rows cannot contaminate real rows.
    grid = (pl.cdiv(rows, tile_rows),)

    out2d = pl.pallas_call(
        functools.partial(_layernorm_kernel, eps=eps),
        out_shape=jax.ShapeDtypeStruct((rows, feat), x.dtype),
        grid_spec=pltpu.PrefetchScalarGridSpec(
            num_scalar_prefetch=0,
            grid=grid,
            in_specs=[
                pl.BlockSpec((tile_rows, feat), lambda i: (i, 0)),
                pl.BlockSpec((1, feat), lambda i: (0, 0)),
                pl.BlockSpec((1, feat), lambda i: (0, 0)),
            ],
            out_specs=pl.BlockSpec((tile_rows, feat), lambda i: (i, 0)),
        ),
        compiler_params=pltpu.CompilerParams(
            dimension_semantics=("parallel",),
            vmem_limit_bytes=vmem_limit_bytes,
        ),
    )(x2d, gamma2d, beta2d)

    return out2d.reshape(orig_shape)


if __name__ == "__main__":
    key = jax.random.PRNGKey(0)
    batch, seq, features = 2, 8, 32
    x = jax.random.normal(key, (batch, seq, features), dtype=jnp.float32)

    # Deterministic parameter init, matching nn.Parameter(torch.ones/zeros(features)).
    gamma = jnp.ones((features,), dtype=jnp.float32)
    beta = jnp.zeros((features,), dtype=jnp.float32)

    out = layer_norm(x, gamma, beta, eps=1e-6)
    out = jax.block_until_ready(out)

    # Pure-JAX reference (torch.std is unbiased, ddof=1; eps added to std).
    mean = jnp.mean(x, axis=-1, keepdims=True)
    std = jnp.std(x, axis=-1, keepdims=True, ddof=1)
    ref = gamma * (x - mean) / (std + 1e-6) + beta

    assert out.shape == x.shape and out.dtype == x.dtype
    assert jnp.allclose(out, ref, atol=1e-4, rtol=1e-4), "mismatch vs reference"
    print("KERNEL_OK")
</pallas_src>

<mosaic_0001>
module attributes {stable_mosaic.version = 11 : i64} {
  func.func @_layernorm_kernel(%arg0: i32, %arg1: memref<16x32xf32, #tpu.memory_space<vmem>>, %arg2: memref<1x32xf32, #tpu.memory_space<vmem>>, %arg3: memref<1x32xf32, #tpu.memory_space<vmem>>, %arg4: memref<16x32xf32, #tpu.memory_space<vmem>>) attributes {dimension_semantics = [#tpu.dimension_semantics<parallel>], iteration_bounds = array<i64: 1>, scalar_prefetch = 0 : i64, scratch_operands = 0 : i64, tpu.core_type = #tpu.core_type<tc>, window_params = [{transform_indices = @transform_0, window_bounds = array<i64: 16, 32>}, {pipeline_mode = #tpu.pipeline_mode<synchronous>, transform_indices = @transform_1, window_bounds = array<i64: 1, 32>}, {pipeline_mode = #tpu.pipeline_mode<synchronous>, transform_indices = @transform_2, window_bounds = array<i64: 1, 32>}, {transform_indices = @transform_3, window_bounds = array<i64: 16, 32>}]} {
    %c0 = arith.constant 0 : index
    %c0_0 = arith.constant 0 : index
    %0 = vector.load %arg1[%c0, %c0_0] : memref<16x32xf32, #tpu.memory_space<vmem>>, vector<16x32xf32>
    %cst = arith.constant dense<0.000000e+00> : vector<16xf32>
    %1 = vector.multi_reduction <add>, %0, %cst [1] : vector<16x32xf32> to vector<16xf32>
    %2 = vector.shape_cast %1 : vector<16xf32> to vector<16x1xf32>
    %3 = arith.mulf %0, %0 : vector<16x32xf32>
    %cst_1 = arith.constant dense<0.000000e+00> : vector<16xf32>
    %4 = vector.multi_reduction <add>, %3, %cst_1 [1] : vector<16x32xf32> to vector<16xf32>
    %5 = vector.shape_cast %4 : vector<16xf32> to vector<16x1xf32>
    %cst_2 = arith.constant 3.125000e-02 : f32
    %6 = vector.broadcast %cst_2 : f32 to vector<16x1xf32>
    %7 = arith.mulf %2, %6 : vector<16x1xf32>
    %cst_3 = arith.constant 3.200000e+01 : f32
    %8 = vector.broadcast %cst_3 : f32 to vector<16x1xf32>
    %9 = arith.mulf %8, %7 : vector<16x1xf32>
    %10 = arith.mulf %9, %7 : vector<16x1xf32>
    %11 = arith.subf %5, %10 : vector<16x1xf32>
    %cst_4 = arith.constant 0.0322580636 : f32
    %12 = vector.broadcast %cst_4 : f32 to vector<16x1xf32>
    %13 = arith.mulf %11, %12 : vector<16x1xf32>
    %cst_5 = arith.constant 0.000000e+00 : f32
    %14 = vector.broadcast %cst_5 : f32 to vector<16x1xf32>
    %15 = arith.maximumf %13, %14 : vector<16x1xf32>
    %16 = math.sqrt %15 : vector<16x1xf32>
    %cst_6 = arith.constant 9.99999997E-7 : f32
    %17 = vector.broadcast %cst_6 : f32 to vector<16x1xf32>
    %18 = arith.addf %16, %17 : vector<16x1xf32>
    %cst_7 = arith.constant 1.000000e+00 : f32
    %19 = vector.broadcast %cst_7 : f32 to vector<16x1xf32>
    %20 = arith.divf %19, %18 : vector<16x1xf32>
    %c0_8 = arith.constant 0 : index
    %c0_9 = arith.constant 0 : index
    %21 = vector.load %arg2[%c0_8, %c0_9] : memref<1x32xf32, #tpu.memory_space<vmem>>, vector<1x32xf32>
    %c0_10 = arith.constant 0 : index
    %c0_11 = arith.constant 0 : index
    %22 = vector.load %arg3[%c0_10, %c0_11] : memref<1x32xf32, #tpu.memory_space<vmem>>, vector<1x32xf32>
    %23 = vector.broadcast %7 : vector<16x1xf32> to vector<16x32xf32>
    %24 = arith.subf %0, %23 : vector<16x32xf32>
    %25 = vector.broadcast %20 : vector<16x1xf32> to vector<16x32xf32>
    %26 = arith.mulf %24, %25 : vector<16x32xf32>
    %27 = vector.broadcast %21 : vector<1x32xf32> to vector<16x32xf32>
    %28 = arith.mulf %26, %27 : vector<16x32xf32>
    %29 = vector.broadcast %22 : vector<1x32xf32> to vector<16x32xf32>
    %30 = arith.addf %28, %29 : vector<16x32xf32>
    %c0_12 = arith.constant 0 : index
    %c0_13 = arith.constant 0 : index
    %31 = vector.load %arg4[%c0_12, %c0_13] : memref<16x32xf32, #tpu.memory_space<vmem>>, vector<16x32xf32>
    tpu.vector_store %arg4[%c0_12, %c0_13], %30 {strides = array<i32>} : memref<16x32xf32, #tpu.memory_space<vmem>>, vector<16x32xf32>,
    return
  }
  func.func @transform_0(%arg0: i32) -> (i32, i32) {
    %c0_i32 = arith.constant 0 : i32
    %c0_i32_0 = arith.constant 0 : i32
    return %arg0, %c0_i32 : i32, i32
  }
  func.func @transform_1(%arg0: i32) -> (i32, i32) {
    %c0_i32 = arith.constant 0 : i32
    %c0_i32_0 = arith.constant 0 : i32
    %c0_i32_1 = arith.constant 0 : i32
    return %c0_i32, %c0_i32_0 : i32, i32
  }
  func.func @transform_2(%arg0: i32) -> (i32, i32) {
    %c0_i32 = arith.constant 0 : i32
    %c0_i32_0 = arith.constant 0 : i32
    %c0_i32_1 = arith.constant 0 : i32
    return %c0_i32, %c0_i32_0 : i32, i32
  }
  func.func @transform_3(%arg0: i32) -> (i32, i32) {
    %c0_i32 = arith.constant 0 : i32
    %c0_i32_0 = arith.constant 0 : i32
    return %arg0, %c0_i32 : i32, i32
  }
}

</mosaic_0001>

<llo_original>
// kernel: tpu_custom_call.1
$region0: #{tpu_custom_call.1}
  #allocation0 [shape = 'u32[]', space=smem, size = 0x4, offset = 0x4, fixed_abs, tag = 'smem constant byte address 0x4 - core index']
  #allocation1 [shape = 'u32[72,128]{1,0:T(1,128)}', space=vmem, size = 0x9000, scoped, tag = 'internal scratch']
  %s0 = inlined_call_operand.hbm [shape: f32[16,32], index: 0, kind: input, shape index: {}]
  %s1 = inlined_call_operand.hbm [shape: f32[1,32], index: 1, kind: input, shape index: {}]
  %s2 = inlined_call_operand.vmem [shape: f32[1,32], index: 2, kind: input, shape index: {}]
  %s3 = inlined_call_operand.hbm [shape: f32[16,32], index: 3, kind: output, shape index: {}]
  %s4 = sld [smem:[#allocation0]]
  $region30: #{tpu_custom_call.1} parent=0
    _
  %s6 = ssub.s32 1, %s4
  %s7 = scalar_select 0, %s6, %s4
  $region1: #{tpu_custom_call.1} parent=0
    #allocation2 [shape = 'u8[8192]{0}', space=vmem, size = 0x2000, scoped, tag = 'input window, operand 0, single buffered']
    #allocation3 [shape = 's32[1]{0}', space=sflag, size = 0x4, scoped, tag = 'scoped memory for tpu_custom_call.1']
    #allocation4 [shape = 's32[1]{0}', space=sflag, size = 0x4, scoped, tag = 'scoped memory for tpu_custom_call.1']
    #allocation5 [shape = 'u8[512]{0}', space=vmem, size = 0x400, scoped, tag = 'input window, operand 1, single buffered']
    #allocation6 [shape = 's32[1]{0}', space=sflag, size = 0x4, scoped, tag = 'scoped memory for tpu_custom_call.1']
    #allocation7 [shape = 'u8[8192]{0}', space=vmem, size = 0x2000, scoped, tag = 'output window, operand 0, single buffered']
    %8 = vsyncpa [#allocation3], 0
    %9 = vsyncpa [#allocation6], 0
    %10 = vsyncpa [#allocation4], 0
    // Predicated region
    $region2: #{tpu_custom_call.1} parent=1 // pred_check
      _
    $region3: #{tpu_custom_call.1} parent=1 // pred_check_branch
      %12 = sbr.rel (0) target = $region5
    $region4: #{tpu_custom_call.1} parent=1 // pred_region
      %14 = vsyncadd [#allocation3], 0
      %s15 = sshll.u32 %s0, 4
      %s16 = int_to_ptr.hbm [resolvable:$true] %s15
      %s17 = sshll.u32 [#allocation2], 4
      %s18 = int_to_ptr.vmem [resolvable:$true] %s17
      %23 = dma.hbm_to_vmem [thread:$0]  %s16, 256, %s18, [#allocation3], 128, 128, 8
    $region5: #{tpu_custom_call.1} parent=1 // pred_fallthru
      _
    // Predicated region
    $region6: #{tpu_custom_call.1} parent=1 // pred_check
      _
    $region7: #{tpu_custom_call.1} parent=1 // pred_check_branch
      %25 = sbr.rel (0) target = $region9
    $region8: #{tpu_custom_call.1} parent=1 // pred_region
      %27 = vsyncadd [#allocation6], 0
      %s29 = sshll.u32 %s1, 4
      %s30 = int_to_ptr.hbm [resolvable:$true] %s29
      %s31 = sshll.u32 [#allocation5], 4
      %s32 = int_to_ptr.vmem [resolvable:$true] %s31
      %34 = dma.hbm_to_vmem [thread:$0]  %s30, 16, %s32, [#allocation6]
    $region9: #{tpu_custom_call.1} parent=1 // pred_fallthru
      _
    // Predicated region
    $region10: #{tpu_custom_call.1} parent=1 // pred_check
      _
    $region11: #{tpu_custom_call.1} parent=1 // pred_check_branch
      %36 = sbr.rel (0) target = $region13
    $region12: #{tpu_custom_call.1} parent=1 // pred_region
      _
    $region13: #{tpu_custom_call.1} parent=1 // pred_fallthru
      _
    // Predicated region
    $region14: #{tpu_custom_call.1} parent=1 // pred_check
      _
    $region15: #{tpu_custom_call.1} parent=1 // pred_check_branch
      %38 = sbr.rel (0) target = $region17
    $region16: #{tpu_custom_call.1} parent=1 // pred_region
      %40 = dma.done [#allocation3], 256
    $region17: #{tpu_custom_call.1} parent=1 // pred_fallthru
      _
    // Predicated region
    $region18: #{tpu_custom_call.1} parent=1 // pred_check
      _
    $region19: #{tpu_custom_call.1} parent=1 // pred_check_branch
      %42 = sbr.rel (0) target = $region21
    $region20: #{tpu_custom_call.1} parent=1 // pred_region
      %44 = dma.done [#allocation6], 16
    $region21: #{tpu_custom_call.1} parent=1 // pred_fallthru
      _
    %v45 = vld [vmem:[#allocation2] sm:$0xff]
    %v46 = vld [vmem:[#allocation2 + $0x8] sm:$0xff]
    %vm47 = vcmask 261120
    %v48 = vsel %vm47, %v45, 0.0
    %49 = vadd.xlane.f32.xlu0 %v48
    %v50 = vpop.xlane.xlu0 %49
    %v51 = vsel %vm47, %v46, 0.0
    %52 = vadd.xlane.f32.xlu0 %v51
    %v53 = vpop.xlane.xlu0 %52
    %v54 = vmul.f32 %v45, %v45
    %v55 = vmul.f32 %v46, %v46
    %v56 = vsel %vm47, %v54, 0.0
    %57 = vadd.xlane.f32.xlu0 %v56
    %v58 = vpop.xlane.xlu0 %57
    %v59 = vsel %vm47, %v55, 0.0
    %60 = vadd.xlane.f32.xlu0 %v59
    %v61 = vpop.xlane.xlu0 %60
    %v62 = vmul.f32 %v50, 0.03125
    %v63 = vmul.f32 %v53, 0.03125
    %v64 = vmul.f32 %v62, 32.0
    %v65 = vmul.f32 %v63, 32.0
    %v66 = vmul.f32 %v64, %v62
    %v67 = vmul.f32 %v65, %v63
    %v68 = vsub.f32 %v58, %v66
    %v69 = vsub.f32 %v61, %v67
    %v70 = vmul.f32 %v68, 0.032258064
    %v71 = vmul.f32 %v69, 0.032258064
    %v72 = vmax.f32 %v70, 0.0
    %v73 = vmax.f32 %v71, 0.0
    %v74 = vrsqrt.pop %v72
    %v75 = vmul.f32 %v74, %v72
    %v76 = vmul.f32 %v75, %v74
    %v77 = vmul.f32 0.5, %v76
    %v78 = vsub.f32 1.5, %v77
    %v79 = vmul.f32 %v74, %v78
    %v80 = vmul.f32 %v72, %v79
    %vm81 = vcmp.eq.f32.partialorder %v72, inf
    %v82 = vsel %vm81, %v72, %v80
    %vm83 = vcmp.eq.f32.partialorder %v72, 0.0
    %v84 = vand.u32 %v72, 2147483648
    %v85 = vsel %vm83, %v84, %v82
    %v86 = vrsqrt.pop %v73
    %v87 = vmul.f32 %v86, %v73
    %v88 = vmul.f32 %v87, %v86
    %v89 = vmul.f32 0.5, %v88
    %v90 = vsub.f32 1.5, %v89
    %v91 = vmul.f32 %v86, %v90
    %v92 = vmul.f32 %v73, %v91
    %vm93 = vcmp.eq.f32.partialorder %v73, inf
    %v94 = vsel %vm93, %v73, %v92
    %vm95 = vcmp.eq.f32.partialorder %v73, 0.0
    %v96 = vand.u32 %v73, 2147483648
    %v97 = vsel %vm95, %v96, %v94
    %v98 = vadd.f32 %v85, 1e-06
    %v99 = vadd.f32 %v97, 1e-06
    %v100 = vrcp.pop %v98
    %v101 = vmul.f32 %v98, %v100
    %v102 = vsub.f32 1.0, %v101
    %v103 = vmul.f32 %v100, %v102
    %v104 = vadd.f32 %v100, %v103
    %vm105 = vweird.f32 %v98
    %vm106 = vweird.f32 %v100
    %vm107 = vmor %vm105, %vm106
    %v108 = vsel %vm107, %v100, %v104
    %v109 = vand.u32 2147483647, %v98
    %vm110 = vcmp.eq.f32.partialorder %v109, 8.507059e+37
    %v111 = vand.u32 %v98, 2147483648
    %v112 = vor.u32 1.1754944e-38, %v111
    %v113 = vsel %vm110, %v112, %v108
    %v114 = vmul.f32 1.0, %v113
    %v115 = vrcp.pop %v99
    %v116 = vmul.f32 %v99, %v115
    %v117 = vsub.f32 1.0, %v116
    %v118 = vmul.f32 %v115, %v117
    %v119 = vadd.f32 %v115, %v118
    %vm120 = vweird.f32 %v99
    %vm121 = vweird.f32 %v115
    %vm122 = vmor %vm120, %vm121
    %v123 = vsel %vm122, %v115, %v119
    %v124 = vand.u32 2147483647, %v99
    %vm125 = vcmp.eq.f32.partialorder %v124, 8.507059e+37
    %v126 = vand.u32 %v99, 2147483648
    %v127 = vor.u32 1.1754944e-38, %v126
    %v128 = vsel %vm125, %v127, %v123
    %v129 = vmul.f32 1.0, %v128
    %v130 = vld [vmem:[#allocation5] sm:$0x1]
    %v131 = vld [vmem:[%s2] sm:$0x1]
    %v132 = vsub.f32 %v45, %v62
    %v133 = vsub.f32 %v46, %v63
    %v134 = vmul.f32 %v132, %v114
    %v135 = vmul.f32 %v133, %v129
    %v137 = vperm.slane %v130, 0
    %v139 = vmul.f32 %v134, %v137
    %v140 = vmul.f32 %v135, %v137
    %v142 = vperm.slane %v131, 0
    %v144 = vadd.f32 %v139, %v142
    %v145 = vadd.f32 %v140, %v142
    %146 = vst.msk [vmem:[#allocation7] sm:$0xff] %vm47, %v144
    %147 = vst.msk [vmem:[#allocation7 + $0x8] sm:$0xff] %vm47, %v145
    // Predicated region
    $region22: #{tpu_custom_call.1} parent=1 // pred_check
      _
    $region23: #{tpu_custom_call.1} parent=1 // pred_check_branch
      %149 = sbr.rel (0) target = $region25
    $region24: #{tpu_custom_call.1} parent=1 // pred_region
      %151 = vsyncadd [#allocation4], 0
      %s152 = sshll.u32 [#allocation7], 4
      %s153 = int_to_ptr.vmem [resolvable:$true] %s152
      %s154 = sshll.u32 %s3, 4
      %s155 = int_to_ptr.hbm [resolvable:$true] %s154
      %160 = dma.vmem_to_hbm [thread:$0]  %s153, 256, %s155, [#allocation4], 128, 128, 8
    $region25: #{tpu_custom_call.1} parent=1 // pred_fallthru
      _
    // Predicated region
    $region26: #{tpu_custom_call.1} parent=1 // pred_check
      _
    $region27: #{tpu_custom_call.1} parent=1 // pred_check_branch
      %162 = sbr.rel (0) target = $region29
    $region28: #{tpu_custom_call.1} parent=1 // pred_region
      %164 = dma.done [#allocation4], 256
    $region29: #{tpu_custom_call.1} parent=1 // pred_fallthru
      _
    %165 = vsyncpa [#allocation3], 1
    %166 = vsyncpa [#allocation6], 1
    %167 = vsyncpa [#allocation4], 1

</llo_original>
